<compile_context>
chip_gen: v5e
topology: v5e:2x2
jax: 0.10.0
libtpu: 0.0.40
codegen_flags: <defaults>
</compile_context>

<pallas_src>
import jax
import jax.numpy as jnp
from jax.experimental import pallas as pl
from jax.experimental.pallas import tpu as pltpu


def _gate_kernel(x_ref, c_ref, o_ref):
    # x_ref / o_ref block: (1, TN, TM, D'); c_ref block: (1, TN, D').
    # Sublane broadcast: each cond row gates its TM token rows. Pure VPU
    # elementwise work in x.dtype; no reshape/relayout of the big tile.
    o_ref[0] = x_ref[0] * c_ref[0][:, None, :]


def _vmem_capacity_bytes():
    try:
        return int(pltpu.get_tpu_info().vmem_capacity_bytes)
    except Exception:
        return 64 << 20          # v7x per-core size: safe lower bound everywhere


def _pick_tiles(n, mp, dp, itemsize, budget, cap):
    """Choose (tn, tm) for the (1, tn, tm, dp) x/out block.

    Mode A (preferred): tile along N with the full M extent -> every HBM fetch
    and writeback is one contiguous run. tn must be an 8-multiple divisor of n
    or n itself (keeps the (1, tn, dp) c block legal).
    Mode B (fallback): full-N block, tile along M with a sublane-aligned tm and
    a cdiv grid (ragged edge), never one giant full-M block.
    """
    sub = 8 * max(1, 4 // itemsize)
    row = dp * itemsize
    group = mp * row
    # Per-block hard ceiling: 2x double-buffered x + out blocks must fit VMEM.
    hard = max(row * sub, int(cap * 0.7) // 4)

    # --- Mode A: tile along N, full M extent (contiguous DMA). ---
    if group <= budget:
        cands = [t for t in range(8, n + 1, 8) if n % t == 0] + [n]
        fitting = [t for t in cands if t * group <= budget]
        if fitting:
            return max(fitting), mp
        small = [t for t in cands if t * group <= hard]
        if small:
            return min(small), mp

    # --- Mode B: full N extent, tile along M. ---
    tm = max(sub, (budget // max(1, n * row)) // sub * sub)
    while n * tm * row > hard and tm > sub:
        tm = max(sub, ((tm // 2) // sub) * sub)
    return n, min(tm, mp)


def _split_for_megacore(b, n, mp, tn, tm, sub):
    """v7x shards 'parallel' grid axes over 2 TensorCores; make sure the grid
    has at least 2 steps when the problem allows it."""
    if b * pl.cdiv(n, tn) * pl.cdiv(mp, tm) >= 2:
        return tn, tm
    if tm >= 2 * sub:                                   # split along M
        half = -(-((tm + 1) // 2) // sub) * sub         # round half up to sublane
        return tn, min(half, tm)
    cands = [t for t in range(8, n, 8) if n % t == 0]   # split along N
    if cands:
        return max(cands), tm
    return tn, tm                                       # genuinely tiny problem


def gate(x, cond, w, bias, *, min_pallas_bytes=2 << 20, donate_x=False):
    """Gate forward (matches owl_wms Gate.forward).

    x:    (B, NM, D)   tokens to gate (NM = N * M)
    cond: (B, N, D)    one conditioning token per group of M x-tokens
    w:    (D, D)       nn.Linear(dim, dim).weight, PyTorch (out, in) layout
    bias: (D,)         nn.Linear bias
    """
    b, nm, d = x.shape
    _, n, dc = cond.shape
    assert dc == d, "cond feature dim must match x feature dim"
    assert nm % n == 0, "x token count must be a multiple of cond token count"
    m = nm // n
    itemsize = jnp.dtype(x.dtype).itemsize

    # Tiny GEMM done once in XLA: silu(cond) @ W.T + bias (PyTorch layout).
    y = cond.astype(jnp.float32)
    y = y * jax.nn.sigmoid(y)
    c = jnp.einsum("bnd,ed->bne", y, w.astype(jnp.float32),
                   preferred_element_type=jnp.float32)
    c = (c + bias.astype(jnp.float32)).astype(x.dtype)                # (B, N, D)

    # Small-problem bypass: pallas_call launch/pipeline overhead dominates;
    # plain XLA fusion of the broadcast-multiply is strictly faster.
    if b * nm * d * itemsize < min_pallas_bytes:
        return (c[:, :, None, :] * x.reshape(b, n, m, d)).reshape(b, nm, d)

    # Lane folding: if D < 128, fold k consecutive tokens of a group into the
    # lane dim so the output store is lane-dense (most important on v5e).
    k = 1
    if d < 128 and 128 % d == 0 and m % (128 // d) == 0:
        k = 128 // d
    mp, dp = m // k, d * k
    c_eff = jnp.tile(c, (1, 1, k)) if k > 1 else c                    # (B, N, D')
    x4 = x.reshape(b, n, mp, dp)                                      # free reshape

    cap = _vmem_capacity_bytes()
    budget = min(16 << 20, max(2 << 20, cap // 6))   # ~10.7 MiB v7x, 16 MiB v5e/v6e
    sub = 8 * max(1, 4 // itemsize)
    tn, tm = _pick_tiles(n, mp, dp, itemsize, budget, cap)
    tn, tm = _split_for_megacore(b, n, mp, tn, tm, sub)

    n_tiles = pl.cdiv(n, tn)
    m_tiles = pl.cdiv(mp, tm)

    blk = tn * tm * dp * itemsize
    c_blk = tn * dp * itemsize
    needed = 4 * blk + 2 * c_blk + (2 << 20)     # dbl-buffered x/out + c + headroom
    vmem_limit = int(min(max(needed, 16 << 20), int(cap * 0.78)))

    cost = pl.CostEstimate(
        flops=int(b * nm * d),                                        # the gate multiply
        transcendentals=0,                                            # silu handled by XLA
        bytes_accessed=int((2 * b * nm * d + b * n * dp) * itemsize),
    )

    out4 = pl.pallas_call(
        _gate_kernel,
        out_shape=jax.ShapeDtypeStruct((b, n, mp, dp), x.dtype),
        grid=(b, n_tiles, m_tiles),
        in_specs=[
            pl.BlockSpec((1, tn, tm, dp), lambda bi, ni, mi: (bi, ni, mi, 0)),  # x tile
            pl.BlockSpec((1, tn, dp),     lambda bi, ni, mi: (bi, ni, 0)),      # gate rows
        ],
        out_specs=pl.BlockSpec((1, tn, tm, dp), lambda bi, ni, mi: (bi, ni, mi, 0)),
        compiler_params=pltpu.CompilerParams(
            dimension_semantics=("parallel", "parallel", "parallel"),
            vmem_limit_bytes=vmem_limit,
        ),
        cost_estimate=cost,
        input_output_aliases=({0: 0} if donate_x else {}),
    )(x4, c_eff)

    return out4.reshape(b, nm, d)


def gate_reference(x, cond, w, bias):
    b, nm, d = x.shape
    _, n, _ = cond.shape
    m = nm // n
    y = cond * jax.nn.sigmoid(cond)
    c = jnp.einsum("bnd,ed->bne", y, w) + bias                        # PyTorch (out, in) layout
    c = jnp.broadcast_to(c[:, :, None, :], (b, n, m, d)).reshape(b, nm, d)
    return c * x


if __name__ == "__main__":
    key = jax.random.PRNGKey(0)

    # --- Test 1: small shape, lane-folding path (D=32 -> D'=128), forced Pallas. ---
    B, N, M, D = 2, 8, 8, 32
    NM = N * M
    kx, kc, kw, kb, k2 = jax.random.split(key, 5)
    x = jax.random.normal(kx, (B, NM, D), dtype=jnp.float32)
    cond = jax.random.normal(kc, (B, N, D), dtype=jnp.float32)
    w = jax.random.normal(kw, (D, D), dtype=jnp.float32) * 0.02       # PyTorch (out, in)
    bias = jax.random.normal(kb, (D,), dtype=jnp.float32) * 0.02

    ref = gate_reference(x, cond, w, bias)
    out = jax.block_until_ready(gate(x, cond, w, bias, min_pallas_bytes=0))
    assert out.shape == (B, NM, D)
    assert jnp.allclose(out, ref, atol=1e-5, rtol=1e-5), "Pallas path mismatch (folded)"

    # Default dispatch (small-problem XLA bypass) must agree too.
    out_bypass = jax.block_until_ready(gate(x, cond, w, bias))
    assert jnp.allclose(out_bypass, ref, atol=1e-5, rtol=1e-5), "bypass path mismatch"

    # --- Test 2: D=128 (no folding), megacore split + ragged M edge, forced Pallas. ---
    B2, N2, M2, D2 = 1, 16, 24, 128
    kx2, kc2, kw2, kb2 = jax.random.split(k2, 4)
    x2 = jax.random.normal(kx2, (B2, N2 * M2, D2), dtype=jnp.float32)
    cond2 = jax.random.normal(kc2, (B2, N2, D2), dtype=jnp.float32)
    w2 = jax.random.normal(kw2, (D2, D2), dtype=jnp.float32) * 0.02
    bias2 = jax.random.normal(kb2, (D2,), dtype=jnp.float32) * 0.02

    ref2 = gate_reference(x2, cond2, w2, bias2)
    out2 = jax.block_until_ready(gate(x2, cond2, w2, bias2, min_pallas_bytes=0))
    assert out2.shape == (B2, N2 * M2, D2)
    assert jnp.allclose(out2, ref2, atol=1e-5, rtol=1e-5), "Pallas path mismatch (ragged)"

    print("KERNEL_OK")
</pallas_src>

<mosaic_0001>
module attributes {stable_mosaic.version = 11 : i64} {
  func.func @_gate_kernel(%arg0: i32, %arg1: i32, %arg2: i32, %arg3: memref<1x8x2x128xf32, #tpu.memory_space<vmem>>, %arg4: memref<1x8x128xf32, #tpu.memory_space<vmem>>, %arg5: memref<1x8x2x128xf32, #tpu.memory_space<vmem>>) attributes {dimension_semantics = [#tpu.dimension_semantics<parallel>, #tpu.dimension_semantics<parallel>, #tpu.dimension_semantics<parallel>], iteration_bounds = array<i64: 2, 1, 1>, scalar_prefetch = 0 : i64, scratch_operands = 0 : i64, tpu.core_type = #tpu.core_type<tc>, window_params = [{transform_indices = @transform_0, window_bounds = array<i64: 1, 8, 2, 128>}, {transform_indices = @transform_1, window_bounds = array<i64: 1, 8, 128>}, {transform_indices = @transform_2, window_bounds = array<i64: 1, 8, 2, 128>}]} {
    %c0 = arith.constant 0 : index
    %c0_0 = arith.constant 0 : index
    %c0_1 = arith.constant 0 : index
    %c0_2 = arith.constant 0 : index
    %0 = vector.load %arg3[%c0, %c0_0, %c0_1, %c0_2] : memref<1x8x2x128xf32, #tpu.memory_space<vmem>>, vector<1x8x2x128xf32>
    %1 = vector.shape_cast %0 : vector<1x8x2x128xf32> to vector<8x2x128xf32>
    %c0_3 = arith.constant 0 : index
    %c0_4 = arith.constant 0 : index
    %c0_5 = arith.constant 0 : index
    %2 = vector.load %arg4[%c0_3, %c0_4, %c0_5] : memref<1x8x128xf32, #tpu.memory_space<vmem>>, vector<1x8x128xf32>
    %3 = vector.shape_cast %2 : vector<1x8x128xf32> to vector<8x128xf32>
    %4 = vector.shape_cast %3 : vector<8x128xf32> to vector<8x1x128xf32>
    %5 = vector.broadcast %4 : vector<8x1x128xf32> to vector<8x2x128xf32>
    %6 = arith.mulf %1, %5 : vector<8x2x128xf32>
    %c0_6 = arith.constant 0 : index
    %c0_7 = arith.constant 0 : index
    %c0_8 = arith.constant 0 : index
    %c0_9 = arith.constant 0 : index
    %7 = vector.load %arg5[%c0_6, %c0_7, %c0_8, %c0_9] : memref<1x8x2x128xf32, #tpu.memory_space<vmem>>, vector<1x8x2x128xf32>
    %8 = vector.shape_cast %7 : vector<1x8x2x128xf32> to vector<8x2x128xf32>
    %9 = vector.shape_cast %6 : vector<8x2x128xf32> to vector<1x8x2x128xf32>
    tpu.vector_store %arg5[%c0_6, %c0_7, %c0_8, %c0_9], %9 {strides = array<i32>} : memref<1x8x2x128xf32, #tpu.memory_space<vmem>>, vector<1x8x2x128xf32>,
    return
  }
  func.func @transform_0(%arg0: i32, %arg1: i32, %arg2: i32) -> (i32, i32, i32, i32) {
    %c0_i32 = arith.constant 0 : i32
    %c0_i32_0 = arith.constant 0 : i32
    return %arg0, %arg1, %arg2, %c0_i32 : i32, i32, i32, i32
  }
  func.func @transform_1(%arg0: i32, %arg1: i32, %arg2: i32) -> (i32, i32, i32) {
    %c0_i32 = arith.constant 0 : i32
    %c0_i32_0 = arith.constant 0 : i32
    return %arg0, %arg1, %c0_i32 : i32, i32, i32
  }
  func.func @transform_2(%arg0: i32, %arg1: i32, %arg2: i32) -> (i32, i32, i32, i32) {
    %c0_i32 = arith.constant 0 : i32
    %c0_i32_0 = arith.constant 0 : i32
    return %arg0, %arg1, %arg2, %c0_i32 : i32, i32, i32, i32
  }
}

</mosaic_0001>

<llo_original>
// kernel: tpu_custom_call.1
$region0: #{tpu_custom_call.1}
  #allocation0 [shape = 'u32[]', space=smem, size = 0x4, offset = 0x4, fixed_abs, tag = 'smem constant byte address 0x4 - core index']
  #allocation1 [shape = 'u32[72,128]{1,0:T(1,128)}', space=vmem, size = 0x9000, scoped, tag = 'internal scratch']
  %s0 = inlined_call_operand.hbm [shape: f32[2,8,2,128], index: 0, kind: input, shape index: {}]
  %s1 = inlined_call_operand.hbm [shape: f32[2,8,128], index: 1, kind: input, shape index: {}]
  %s2 = inlined_call_operand.hbm [shape: f32[2,8,2,128], index: 2, kind: output, shape index: {}]
  %s3 = sld [smem:[#allocation0]]
  $region49: #{tpu_custom_call.1} parent=0
    _
  %s5 = ssub.s32 1, %s3
  %s6 = scalar_select 0, %s5, %s3
  $region1: #{tpu_custom_call.1} parent=0
    #allocation2 [shape = 'u8[16384]{0}', space=vmem, size = 0x4000, scoped, tag = 'input window, operand 0']
    #allocation3 [shape = 's32[2]{0}', space=sflag, size = 0x8, scoped, tag = 'scoped memory for tpu_custom_call.1']
    #allocation4 [shape = 's32[2]{0}', space=sflag, size = 0x8, scoped, tag = 'scoped memory for tpu_custom_call.1']
    #allocation5 [shape = 'u8[8192]{0}', space=vmem, size = 0x2000, scoped, tag = 'input window, operand 1']
    #allocation6 [shape = 's32[2]{0}', space=sflag, size = 0x8, scoped, tag = 'scoped memory for tpu_custom_call.1']
    #allocation7 [shape = 'u8[16384]{0}', space=vmem, size = 0x4000, scoped, tag = 'output window, operand 0']
    %7 = vsyncpa [#allocation3], 0
    %s8 = scalar_lea.sflag [#allocation3], 1
    %9 = vsyncpa %s8, 0
    %10 = vsyncpa [#allocation6], 0
    %s11 = scalar_lea.sflag [#allocation6], 1
    %12 = vsyncpa %s11, 0
    %13 = vsyncpa [#allocation4], 0
    %s14 = scalar_lea.sflag [#allocation4], 1
    %15 = vsyncpa %s14, 0
    loop: start=0, step=1, limit=4
    $region2: #{tpu_custom_call.1} parent=1 // loop_pre_header
      _
    $region3: #{tpu_custom_call.1} parent=1 // loop_header
      %s17 = sphi 0, %s21
      %p18 = scmp.ge.s32.totalorder %s17, 4
      %s24 = sphi 0, %s43
      %s25 = sphi 0, %s39
      %s26 = sphi 0, %s35
      %s27 = sphi 0, %s24
      %s28 = sphi 0, %s25
      %s29 = sphi 0, %s26
      %s30 = sphi 0, %s27
      %s31 = sphi 0, %s28
      %s32 = sphi 0, %s29
      %s50 = sphi 0, %s52
      %s53 = sphi 0, %s50
      %s54 = sphi 0, %s53
      %s70 = sphi 0, %s54
      %s78 = sphi 0, %s80
      %s81 = sphi 0, %s78
      %s82 = sphi 0, %s81
      %s98 = sphi 0, %s82
      %s108 = sphi 0, %s110
      %s111 = sphi 0, %s108
      %s112 = sphi 0, %s111
      %s128 = sphi 0, %s112
    $region4: #{tpu_custom_call.1} parent=1 // loop_header_branch
      %20 = sbr.rel (%p18) target = $region8
    $region5: #{tpu_custom_call.1} parent=1 // loop_body
      %s22 = ssub.s32 %s17, 1
      %s23 = ssub.s32 %s17, 2
      %s33 = sadd.s32 1, %s26
      %p34 = scmp.ge.s32.totalorder %s33, 1
      %s35 = scalar_select %p34, 0, %s33
      %s36 = sadd.s32 1, %s25
      %s37 = scalar_select %p34, %s36, %s25
      %p38 = scmp.ge.s32.totalorder %s37, 1
      %s39 = scalar_select %p38, 0, %s37
      %s40 = sadd.s32 1, %s24
      %s41 = scalar_select %p38, %s40, %s24
      %p42 = scmp.ge.s32.totalorder %s41, 2
      %s43 = scalar_select %p42, 0, %s41
      %s44 = ssub.s32 %s24, %s43
      %s45 = ssub.s32 %s25, %s39
      %s46 = sor.u32 %s44, %s45
      %s47 = ssub.s32 %s26, %s35
      %s48 = sor.u32 %s46, %s47
      %p49 = scmp.eq.s32.totalorder %s48, 0
      %s51 = sadd.s32 %s50, 1
      %s52 = scalar_select %p49, %s50, %s51
      %p55 = pneg %p49
      %p56 = scmp.eq.s32.totalorder %s17, 1
      %p57 = por %p55, %p56
      %p58 = scmp.ne.s32.totalorder %s50, %s53
      %p59 = scmp.eq.s32.totalorder %s17, 0
      %p60 = por %p58, %p59
      %p61 = scmp.ne.s32.totalorder %s50, %s53
      %p62 = scmp.eq.s32.totalorder %s22, 1
      %p63 = por %p61, %p62
      %p64 = scmp.ne.s32.totalorder %s53, %s54
      %p65 = scmp.eq.s32.totalorder %s22, 0
      %p66 = por %p64, %p65
      %p67 = scmp.ne.s32.totalorder %s53, %s54
      %p68 = scmp.eq.s32.totalorder %s23, 1
      %p69 = por %p67, %p68
      %p71 = scmp.ne.s32.totalorder %s54, %s70
      %p72 = scmp.eq.s32.totalorder %s23, 0
      %p73 = por %p71, %p72
      %s74 = ssub.s32 %s24, %s43
      %s75 = ssub.s32 %s25, %s39
      %s76 = sor.u32 %s74, %s75
      %p77 = scmp.eq.s32.totalorder %s76, 0
      %s79 = sadd.s32 %s78, 1
      %s80 = scalar_select %p77, %s78, %s79
      %p83 = pneg %p77
      %p84 = scmp.eq.s32.totalorder %s17, 1
      %p85 = por %p83, %p84
      %p86 = scmp.ne.s32.totalorder %s78, %s81
      %p87 = scmp.eq.s32.totalorder %s17, 0
      %p88 = por %p86, %p87
      %p89 = scmp.ne.s32.totalorder %s78, %s81
      %p90 = scmp.eq.s32.totalorder %s22, 1
      %p91 = por %p89, %p90
      %p92 = scmp.ne.s32.totalorder %s81, %s82
      %p93 = scmp.eq.s32.totalorder %s22, 0
      %p94 = por %p92, %p93
      %p95 = scmp.ne.s32.totalorder %s81, %s82
      %p96 = scmp.eq.s32.totalorder %s23, 1
      %p97 = por %p95, %p96
      %p99 = scmp.ne.s32.totalorder %s82, %s98
      %p100 = scmp.eq.s32.totalorder %s23, 0
      %p101 = por %p99, %p100
      %s102 = ssub.s32 %s24, %s43
      %s103 = ssub.s32 %s25, %s39
      %s104 = sor.u32 %s102, %s103
      %s105 = ssub.s32 %s26, %s35
      %s106 = sor.u32 %s104, %s105
      %p107 = scmp.eq.s32.totalorder %s106, 0
      %s109 = sadd.s32 %s108, 1
      %s110 = scalar_select %p107, %s108, %s109
      %p113 = pneg %p107
      %p114 = scmp.eq.s32.totalorder %s17, 1
      %p115 = por %p113, %p114
      %p116 = scmp.ne.s32.totalorder %s108, %s111
      %p117 = scmp.eq.s32.totalorder %s17, 0
      %p118 = por %p116, %p117
      %p119 = scmp.ne.s32.totalorder %s108, %s111
      %p120 = scmp.eq.s32.totalorder %s22, 1
      %p121 = por %p119, %p120
      %p122 = scmp.ne.s32.totalorder %s111, %s112
      %p123 = scmp.eq.s32.totalorder %s22, 0
      %p124 = por %p122, %p123
      %p125 = scmp.ne.s32.totalorder %s111, %s112
      %p126 = scmp.eq.s32.totalorder %s23, 1
      %p127 = por %p125, %p126
      %p129 = scmp.ne.s32.totalorder %s112, %s128
      %p130 = scmp.eq.s32.totalorder %s23, 0
      %p131 = por %p129, %p130
      %p132 = scmp.le.s32.totalorder 1, %s17
      %p133 = scmp.lt.s32.totalorder %s17, 3
      %p134 = pnand %p132, %p133
      %p135 = pneg %p134
      // Predicated region
      $region9: #{tpu_custom_call.1} parent=5 // pred_check
        _
      $region10: #{tpu_custom_call.1} parent=5 // pred_check_branch
        %137 = sbr.rel (%p134) target = $region12
      $region11: #{tpu_custom_call.1} parent=5 // pred_region
        %s138 = ssub.s32 %s17, 1
      $region12: #{tpu_custom_call.1} parent=5 // pred_fallthru
        _
      %p139 = scmp.lt.s32.totalorder %s17, 2
      // Predicated region
      $region13: #{tpu_custom_call.1} parent=5 // pred_check
        %p140 = pneg %p139
      $region14: #{tpu_custom_call.1} parent=5 // pred_check_branch
        %142 = sbr.rel (%p140) target = $region16
      $region15: #{tpu_custom_call.1} parent=5 // pred_region
        // Predicated region
        $region17: #{tpu_custom_call.1} parent=15 // pred_check
          %p143 = pneg %p60
        $region18: #{tpu_custom_call.1} parent=15 // pred_check_branch
          %145 = sbr.rel (%p143) target = $region20
        $region19: #{tpu_custom_call.1} parent=15 // pred_region
          %s146 = sand.u32 %s50, 1
          %s147 = scalar_lea.sflag [#allocation3], %s146
          %s148 = sand.u32 %s50, 1
          %s149 = smul.addr %s148, 16
          %s150 = scalar_lea.vmem [#allocation2], %s149
          %s151 = smul.u32 8, %s25
          %153 = vsyncadd %s147, 0
          %s154 = sadd.s32 %s26, %s151
          %s155 = smul.addr %s24, 8
          %s156 = sadd.s32 %s154, %s155
          %s157 = smul.addr %s156, 2
          %s158 = scalar_lea.hbm %s0, %s157
          %s159 = sshll.u32 %s158, 4
          %s160 = int_to_ptr.hbm [resolvable:$true] %s159
          %s161 = sshll.u32 %s150, 4
          %s162 = int_to_ptr.vmem [resolvable:$true] %s161
          %167 = dma.hbm_to_vmem [thread:$0]  %s160, 256, %s162, %s147, 32, 32, 2
        $region20: #{tpu_custom_call.1} parent=15 // pred_fallthru
          _
        // Predicated region
        $region21: #{tpu_custom_call.1} parent=15 // pred_check
          %p168 = pneg %p88
        $region22: #{tpu_custom_call.1} parent=15 // pred_check_branch
          %170 = sbr.rel (%p168) target = $region24
        $region23: #{tpu_custom_call.1} parent=15 // pred_region
          %s171 = sand.u32 %s78, 1
          %s172 = scalar_lea.sflag [#allocation6], %s171
          %s173 = sand.u32 %s78, 1
          %s174 = smul.addr %s173, 8
          %s175 = scalar_lea.vmem [#allocation5], %s174
          %177 = vsyncadd %s172, 0
          %s178 = sadd.s32 %s25, %s24
          %s179 = smul.addr %s178, 8
          %s180 = scalar_lea.hbm %s1, %s179
          %s182 = sshll.u32 %s180, 4
          %s183 = int_to_ptr.hbm [resolvable:$true] %s182
          %s184 = sshll.u32 %s175, 4
          %s185 = int_to_ptr.vmem [resolvable:$true] %s184
          %187 = dma.hbm_to_vmem [thread:$0]  %s183, 128, %s185, %s172
        $region24: #{tpu_custom_call.1} parent=15 // pred_fallthru
          _
      $region16: #{tpu_custom_call.1} parent=5 // pred_fallthru
        _
      %p188 = scmp.le.s32.totalorder 1, %s17
      %p189 = scmp.lt.s32.totalorder %s17, 3
      %p190 = pnand %p188, %p189
      %p191 = pneg %p190
      // Predicated region
      $region25: #{tpu_custom_call.1} parent=5 // pred_check
        _
      $region26: #{tpu_custom_call.1} parent=5 // pred_check_branch
        %193 = sbr.rel (%p190) target = $region28
      $region27: #{tpu_custom_call.1} parent=5 // pred_region
        %s194 = ssub.s32 %s17, 1
        %s195 = sand.u32 %s53, 1
        %s196 = scalar_lea.sflag [#allocation3], %s195
        %s197 = sand.u32 %s53, 1
        %s198 = smul.addr %s197, 16
        %s199 = scalar_lea.vmem [#allocation2], %s198
        // Predicated region
        $region29: #{tpu_custom_call.1} parent=27 // pred_check
          %p200 = pneg %p66
        $region30: #{tpu_custom_call.1} parent=27 // pred_check_branch
          %202 = sbr.rel (%p200) target = $region32
        $region31: #{tpu_custom_call.1} parent=27 // pred_region
          %204 = dma.done %s196, 256
        $region32: #{tpu_custom_call.1} parent=27 // pred_fallthru
          _
        %s205 = sand.u32 %s81, 1
        %s206 = scalar_lea.sflag [#allocation6], %s205
        %s207 = sand.u32 %s81, 1
        %s208 = smul.addr %s207, 8
        %s209 = scalar_lea.vmem [#allocation5], %s208
        // Predicated region
        $region33: #{tpu_custom_call.1} parent=27 // pred_check
          %p210 = pneg %p94
        $region34: #{tpu_custom_call.1} parent=27 // pred_check_branch
          %212 = sbr.rel (%p210) target = $region36
        $region35: #{tpu_custom_call.1} parent=27 // pred_region
          %214 = dma.done %s206, 128
        $region36: #{tpu_custom_call.1} parent=27 // pred_fallthru
          _
        %s215 = sand.u32 %s53, 1
        %s216 = scalar_lea.sflag [#allocation3], %s215
        %s217 = sand.u32 %s53, 1
        %s218 = smul.addr %s217, 16
        %s219 = scalar_lea.vmem [#allocation2], %s218
        %p220 = pneg %p66
        %p221 = pneg %p63
        %s222 = sand.u32 %s81, 1
        %s223 = scalar_lea.sflag [#allocation6], %s222
        %s224 = sand.u32 %s81, 1
        %s225 = smul.addr %s224, 8
        %s226 = scalar_lea.vmem [#allocation5], %s225
        %p227 = pneg %p94
        %p228 = pneg %p91
        %p229 = pneg %p124
        %p230 = pneg %p121
        %s231 = sand.u32 %s111, 1
        %s232 = scalar_lea.sflag [#allocation4], %s231
        %s233 = sand.u32 %s111, 1
        %s234 = smul.addr %s233, 16
        %s235 = scalar_lea.vmem [#allocation7], %s234
        %s236 = smul.u32 8, %s28
        %s237 = smul.u32 8, %s28
        %v238 = vld [vmem:[%s199] sm:$0x3]
        %v239 = vld [vmem:[%s199 + $0x2] sm:$0x3]
        %v240 = vld [vmem:[%s199 + $0x4] sm:$0x3]
        %v241 = vld [vmem:[%s199 + $0x6] sm:$0x3]
        %v242 = vld [vmem:[%s199 + $0x8] sm:$0x3]
        %v243 = vld [vmem:[%s199 + $0xa] sm:$0x3]
        %v244 = vld [vmem:[%s199 + $0xc] sm:$0x3]
        %v245 = vld [vmem:[%s199 + $0xe] sm:$0x3]
        %v246 = vld [vmem:[%s209] sm:$0xff]
        %v248 = vrot.slane %v246, 1
        %v249 = vrot.slane %v246, 2
        %v250 = vrot.slane %v246, 3
        %v251 = vrot.slane %v246, 4
        %v252 = vrot.slane %v246, 5
        %v253 = vrot.slane %v246, 6
        %v254 = vrot.slane %v246, 7
        %v255 = vperm.slane %v246, 0
        %v256 = vperm.slane %v248, 0
        %v257 = vperm.slane %v249, 0
        %v258 = vperm.slane %v250, 0
        %v259 = vperm.slane %v251, 0
        %v260 = vperm.slane %v252, 0
        %v261 = vperm.slane %v253, 0
        %v262 = vperm.slane %v254, 0
        %v271 = vmul.f32 %v238, %v255
        %v272 = vmul.f32 %v239, %v256
        %v273 = vmul.f32 %v240, %v257
        %v274 = vmul.f32 %v241, %v258
        %v275 = vmul.f32 %v242, %v259
        %v276 = vmul.f32 %v243, %v260
        %v277 = vmul.f32 %v244, %v261
        %v278 = vmul.f32 %v245, %v262
        %279 = vst [vmem:[%s235] sm:$0x3] %v271
        %280 = vst [vmem:[%s235 + $0x2] sm:$0x3] %v272
        %281 = vst [vmem:[%s235 + $0x4] sm:$0x3] %v273
        %282 = vst [vmem:[%s235 + $0x6] sm:$0x3] %v274
        %283 = vst [vmem:[%s235 + $0x8] sm:$0x3] %v275
        %284 = vst [vmem:[%s235 + $0xa] sm:$0x3] %v276
        %285 = vst [vmem:[%s235 + $0xc] sm:$0x3] %v277
        %286 = vst [vmem:[%s235 + $0xe] sm:$0x3] %v278
        %s287 = sand.u32 %s111, 1
        %s288 = scalar_lea.sflag [#allocation4], %s287
        %s289 = sand.u32 %s111, 1
        %s290 = smul.addr %s289, 16
        %s291 = scalar_lea.vmem [#allocation7], %s290
        // Predicated region
        $region37: #{tpu_custom_call.1} parent=27 // pred_check
          %p292 = pneg %p121
        $region38: #{tpu_custom_call.1} parent=27 // pred_check_branch
          %294 = sbr.rel (%p292) target = $region40
        $region39: #{tpu_custom_call.1} parent=27 // pred_region
          %s295 = smul.u32 8, %s28
          %297 = vsyncadd %s288, 0
          %s298 = sadd.s32 %s29, %s295
          %s299 = smul.addr %s27, 8
          %s300 = sadd.s32 %s298, %s299
          %s301 = smul.addr %s300, 2
          %s302 = scalar_lea.hbm %s2, %s301
          %s303 = sshll.u32 %s291, 4
          %s304 = int_to_ptr.vmem [resolvable:$true] %s303
          %s305 = sshll.u32 %s302, 4
          %s306 = int_to_ptr.hbm [resolvable:$true] %s305
          %311 = dma.vmem_to_hbm [thread:$0]  %s304, 256, %s306, %s288, 32, 32, 2
        $region40: #{tpu_custom_call.1} parent=27 // pred_fallthru
          _
      $region28: #{tpu_custom_call.1} parent=5 // pred_fallthru
        _
      %p312 = scmp.le.s32.totalorder 2, %s17
      // Predicated region
      $region41: #{tpu_custom_call.1} parent=5 // pred_check
        %p313 = pneg %p312
      $region42: #{tpu_custom_call.1} parent=5 // pred_check_branch
        %315 = sbr.rel (%p313) target = $region44
      $region43: #{tpu_custom_call.1} parent=5 // pred_region
        %s316 = ssub.s32 %s17, 2
        // Predicated region
        $region45: #{tpu_custom_call.1} parent=43 // pred_check
          %p317 = pneg %p127
        $region46: #{tpu_custom_call.1} parent=43 // pred_check_branch
          %319 = sbr.rel (%p317) target = $region48
        $region47: #{tpu_custom_call.1} parent=43 // pred_region
          %s320 = sand.u32 %s112, 1
          %s321 = scalar_lea.sflag [#allocation4], %s320
          %s322 = sand.u32 %s112, 1
          %s323 = smul.addr %s322, 16
          %s324 = scalar_lea.vmem [#allocation7], %s323
          %326 = dma.done %s321, 256
        $region48: #{tpu_custom_call.1} parent=43 // pred_fallthru
          _
      $region44: #{tpu_custom_call.1} parent=5 // pred_fallthru
        _
    $region6: #{tpu_custom_call.1} parent=1 // loop_footer
      %s21 = sadd.s32 1, %s17
    $region7: #{tpu_custom_call.1} parent=1 // loop_footer_branch
      %16 = sbr.rel target = $region3
    $region8: #{tpu_custom_call.1} parent=1 // loop_exit
      _
    %327 = vsyncpa [#allocation3], 1
    %s328 = scalar_lea.sflag [#allocation3], 1
    %329 = vsyncpa %s328, 1
    %330 = vsyncpa [#allocation6], 1
    %s331 = scalar_lea.sflag [#allocation6], 1
    %332 = vsyncpa %s331, 1
    %333 = vsyncpa [#allocation4], 1
    %s334 = scalar_lea.sflag [#allocation4], 1
    %335 = vsyncpa %s334, 1

</llo_original>
